<compile_context>
chip_gen: v7x
topology: tpu7x:2x2x1
jax: 0.10.0
libtpu: 0.0.40
codegen_flags: <defaults>
</compile_context>

<pallas_src>
import functools
import math

import jax
import jax.numpy as jnp
from jax.experimental import pallas as pl
from jax.experimental.pallas import tpu as pltpu


def _layernorm_kernel(alpha_ref, bias_ref, x_ref, o_ref, *, eps: float, d_model: int):
    # x_ref: (row_tile, d_model) block in VMEM; alpha/bias are (1,) scalars in SMEM.
    xf = x_ref[...].astype(jnp.float32)

    # Two-pass statistics (numerically matches torch's (x-mean)^2 computation).
    mean = jnp.sum(xf, axis=-1, keepdims=True) * (1.0 / d_model)
    diff = xf - mean
    # Unbiased variance (ddof=1) to match torch.std's default.
    var = jnp.sum(diff * diff, axis=-1, keepdims=True) * (1.0 / (d_model - 1))
    std = jnp.sqrt(var)

    # Per-row (row_tile, 1) scalars: exact divide costs nothing next to the DMA.
    scale = alpha_ref[0] / (std + eps)
    # out = alpha*(x-mean)/(std+eps) + bias  ==  diff*scale + bias  (one FMA/elem)
    o_ref[...] = (diff * scale + bias_ref[0]).astype(o_ref.dtype)


def _tpu_generation_params():
    """(num_tensorcores_per_chip, safe scoped-VMEM cap in bytes)."""
    try:
        kind = jax.devices()[0].device_kind.lower()
    except Exception:  # pragma: no cover - conservative fallback
        kind = ""
    if "7" in kind:
        # v7x: 2 TCs/chip, only 64 MiB physical VMEM per TC -> leave headroom.
        return 2, 48 * 1024 * 1024
    # v5e / v6e: 1 TC/chip, 128 MiB physical VMEM.
    return 1, 64 * 1024 * 1024


def _choose_row_tile(rows: int, d_model: int, itemsize: int,
                     num_cores: int, vmem_cap_bytes: int) -> int:
    """Largest row tile whose 2x(in)+2x(out) double buffers plus ~2 f32 working
    blocks fit under the VMEM cap, capped at ~8 MiB per input block (streaming
    perf plateaus there), rounded to the dtype's sublane packing, and capped so
    each TensorCore gets at least one grid step on multi-TC chips."""
    pack = max(8, 32 // max(1, itemsize))          # f32: 8, bf16: 16, int8: 32
    headroom = 8 * 1024 * 1024
    budget = max(vmem_cap_bytes - headroom, 4 * 1024 * 1024)
    # Per-row bytes: 2 in + 2 out buffers (dtype) + xf & diff f32 temporaries.
    per_row = d_model * (4 * itemsize + 2 * 4)
    rt = budget // max(1, per_row)
    rt = min(rt, (8 * 1024 * 1024) // max(1, d_model * itemsize))   # ~8 MiB in-block cap
    rt = max(pack, (rt // pack) * pack)
    if num_cores > 1 and rows > pack:
        # Ensure >= num_cores grid steps so both TCs get work under "parallel".
        split = -(-rows // num_cores)                       # ceil(rows / cores)
        split = max(pack, ((split + pack - 1) // pack) * pack)
        rt = min(rt, split)
    return int(rt)


def layer_normalization(x, alpha, bias, *, eps: float = 10000.0, row_tile: int | None = None):
    """Pallas TPU forward of the PyTorch LayerNormalization module.

    x: (..., d_model).  alpha, bias: shape (1,) scalar parameters.
    """
    orig_shape = x.shape
    d_model = int(orig_shape[-1])
    assert d_model >= 2, "d_model must be >= 2 (unbiased std divides by d_model-1)"
    rows = int(math.prod(orig_shape[:-1]))
    x2d = x.reshape(rows, d_model)

    # TODO(synk): if d_model is not a multiple of 128 the output stores lower to
    # masked vst.msk; for that case pad the lane axis in the wrapper and exclude
    # padded lanes from the statistics.  (Typical transformer d_model is fine.)

    itemsize = jnp.dtype(x.dtype).itemsize
    num_cores, vmem_cap = _tpu_generation_params()
    if row_tile is None:
        row_tile = _choose_row_tile(rows, d_model, itemsize, num_cores, vmem_cap)

    # Ragged tail without extra HBM passes (no jnp.pad / output slice):
    #  - whole input fits in one tile -> single full-extent block (legal even
    #    when `rows` is not a multiple of 8),
    #  - otherwise grid = cdiv(rows, row_tile); Pallas masks the boundary
    #    block's out-of-range rows on store, and rows are independent.
    if rows <= row_tile:
        row_tile = rows
    else:
        assert row_tile % 8 == 0 and row_tile > 0
    grid_len = pl.cdiv(rows, row_tile)

    kernel = functools.partial(_layernorm_kernel, eps=float(eps), d_model=d_model)

    total_elems = rows * d_model
    cost = pl.CostEstimate(
        flops=int(7 * total_elems),
        transcendentals=int(rows),                       # one sqrt + divide per row
        bytes_accessed=int(2 * total_elems * itemsize),  # read x once, write out once
    )

    out2d = pl.pallas_call(
        kernel,
        out_shape=jax.ShapeDtypeStruct((rows, d_model), x.dtype),
        grid=(grid_len,),
        in_specs=[
            # Scalar params live in SMEM, identical for every grid step.
            pl.BlockSpec(memory_space=pltpu.MemorySpace.SMEM),
            pl.BlockSpec(memory_space=pltpu.MemorySpace.SMEM),
            pl.BlockSpec((row_tile, d_model), lambda i: (i, 0)),
        ],
        out_specs=pl.BlockSpec((row_tile, d_model), lambda i: (i, 0)),
        compiler_params=pltpu.CompilerParams(
            dimension_semantics=("parallel",),
            vmem_limit_bytes=int(vmem_cap),
        ),
        cost_estimate=cost,
    )(alpha.astype(jnp.float32).reshape(1), bias.astype(jnp.float32).reshape(1), x2d)

    return out2d.reshape(orig_shape)


if __name__ == "__main__":
    # Module init: alpha = ones(1), bias = ones(1), eps = 10000.0
    # TODO(synk): eps=10000.0 faithfully reproduces the module's ctor default;
    # it looks like a bug in the original spec (usual LayerNorm eps ~1e-5).
    d_model = 128          # lane-dense last dim (multiple of 128)
    batch, seq = 2, 8
    eps = 10000.0

    key0, key1, key2 = jax.random.split(jax.random.PRNGKey(0), 3)
    x = jax.random.normal(key0, (batch, seq, d_model), dtype=jnp.float32)
    alpha = jnp.ones((1,), dtype=jnp.float32)
    bias = jnp.ones((1,), dtype=jnp.float32)

    def ref_fn(t):
        mean = jnp.mean(t, axis=-1, keepdims=True)
        std = jnp.std(t, axis=-1, keepdims=True, ddof=1)
        return alpha[0] * (t - mean) / (std + eps) + bias[0]

    out = jax.block_until_ready(layer_normalization(x, alpha, bias, eps=eps))
    assert out.shape == x.shape
    assert jnp.allclose(out, ref_fn(x), atol=1e-5, rtol=1e-5)

    # Row count not a multiple of 8: exercises the full-extent single-block path.
    x2 = jax.random.normal(key1, (3, 5, d_model), dtype=jnp.float32)
    out2 = jax.block_until_ready(layer_normalization(x2, alpha, bias, eps=eps))
    assert out2.shape == x2.shape
    assert jnp.allclose(out2, ref_fn(x2), atol=1e-5, rtol=1e-5)

    # Ragged multi-step grid (rows=21, tile=8): exercises the masked boundary
    # block path -- no wrapper pad or output slice.
    x3 = jax.random.normal(key2, (3, 7, d_model), dtype=jnp.float32)
    out3 = jax.block_until_ready(layer_normalization(x3, alpha, bias, eps=eps, row_tile=8))
    assert out3.shape == x3.shape
    assert jnp.allclose(out3, ref_fn(x3), atol=1e-5, rtol=1e-5)

    print("KERNEL_OK")
</pallas_src>

<mosaic_0001>
module attributes {stable_mosaic.version = 11 : i64} {
  func.func @_layernorm_kernel(%arg0: i32, %arg1: memref<1xf32, #tpu.memory_space<smem>>, %arg2: memref<1xf32, #tpu.memory_space<smem>>, %arg3: memref<16x128xf32, #tpu.memory_space<vmem>>, %arg4: memref<16x128xf32, #tpu.memory_space<vmem>>) attributes {dimension_semantics = [#tpu.dimension_semantics<parallel>], iteration_bounds = array<i64: 1>, scalar_prefetch = 0 : i64, scratch_operands = 0 : i64, tpu.core_type = #tpu.core_type<tc>, window_params = [{transform_indices = @transform_0, window_bounds = array<i64: 1>}, {transform_indices = @transform_1, window_bounds = array<i64: 1>}, {transform_indices = @transform_2, window_bounds = array<i64: 16, 128>}, {transform_indices = @transform_3, window_bounds = array<i64: 16, 128>}]} {
    %c0 = arith.constant 0 : index
    %c0_0 = arith.constant 0 : index
    %0 = vector.load %arg3[%c0, %c0_0] : memref<16x128xf32, #tpu.memory_space<vmem>>, vector<16x128xf32>
    %cst = arith.constant dense<0.000000e+00> : vector<16xf32>
    %1 = vector.multi_reduction <add>, %0, %cst [1] : vector<16x128xf32> to vector<16xf32>
    %2 = vector.shape_cast %1 : vector<16xf32> to vector<16x1xf32>
    %cst_1 = arith.constant 7.812500e-03 : f32
    %3 = vector.broadcast %cst_1 : f32 to vector<16x1xf32>
    %4 = arith.mulf %2, %3 : vector<16x1xf32>
    %5 = vector.broadcast %4 : vector<16x1xf32> to vector<16x128xf32>
    %6 = arith.subf %0, %5 : vector<16x128xf32>
    %7 = arith.mulf %6, %6 : vector<16x128xf32>
    %cst_2 = arith.constant dense<0.000000e+00> : vector<16xf32>
    %8 = vector.multi_reduction <add>, %7, %cst_2 [1] : vector<16x128xf32> to vector<16xf32>
    %9 = vector.shape_cast %8 : vector<16xf32> to vector<16x1xf32>
    %cst_3 = arith.constant 0.00787401571 : f32
    %10 = vector.broadcast %cst_3 : f32 to vector<16x1xf32>
    %11 = arith.mulf %9, %10 : vector<16x1xf32>
    %12 = math.sqrt %11 : vector<16x1xf32>
    %c0_4 = arith.constant 0 : index
    %13 = memref.load %arg1[%c0_4] : memref<1xf32, #tpu.memory_space<smem>>
    %cst_5 = arith.constant 1.000000e+04 : f32
    %14 = vector.broadcast %cst_5 : f32 to vector<16x1xf32>
    %15 = arith.addf %12, %14 : vector<16x1xf32>
    %16 = vector.broadcast %13 : f32 to vector<16x1xf32>
    %17 = arith.divf %16, %15 : vector<16x1xf32>
    %18 = vector.broadcast %17 : vector<16x1xf32> to vector<16x128xf32>
    %19 = arith.mulf %6, %18 : vector<16x128xf32>
    %c0_6 = arith.constant 0 : index
    %20 = memref.load %arg2[%c0_6] : memref<1xf32, #tpu.memory_space<smem>>
    %21 = vector.broadcast %20 : f32 to vector<16x128xf32>
    %22 = arith.addf %19, %21 : vector<16x128xf32>
    %c0_7 = arith.constant 0 : index
    %c0_8 = arith.constant 0 : index
    %23 = vector.load %arg4[%c0_7, %c0_8] : memref<16x128xf32, #tpu.memory_space<vmem>>, vector<16x128xf32>
    tpu.vector_store %arg4[%c0_7, %c0_8], %22 {strides = array<i32>} : memref<16x128xf32, #tpu.memory_space<vmem>>, vector<16x128xf32>,
    return
  }
  func.func @transform_0(%arg0: i32) -> i32 {
    %c0_i32 = arith.constant 0 : i32
    %c0_i32_0 = arith.constant 0 : i32
    return %c0_i32 : i32
  }
  func.func @transform_1(%arg0: i32) -> i32 {
    %c0_i32 = arith.constant 0 : i32
    %c0_i32_0 = arith.constant 0 : i32
    return %c0_i32 : i32
  }
  func.func @transform_2(%arg0: i32) -> (i32, i32) {
    %c0_i32 = arith.constant 0 : i32
    %c0_i32_0 = arith.constant 0 : i32
    return %arg0, %c0_i32 : i32, i32
  }
  func.func @transform_3(%arg0: i32) -> (i32, i32) {
    %c0_i32 = arith.constant 0 : i32
    %c0_i32_0 = arith.constant 0 : i32
    return %arg0, %c0_i32 : i32, i32
  }
}

</mosaic_0001>

<llo_original>
// kernel: tpu_custom_call.1
$region0: #{tpu_custom_call.1}
  #allocation0 [shape = 'u32[]', space=smem, size = 0x4, offset = 0x4, fixed_abs, tag = 'smem constant byte address 0x4 - core index']
  #allocation1 [shape = 'u32[144,128]{1,0:T(1,128)}', space=vmem, size = 0x12000, scoped, tag = 'internal scratch']
  #allocation2 [shape = 'f32[1]{0:T(128)S(6)}', space=smem, size = 0x200, scoped, tag = 'scoped memory for tpu_custom_call.1']
  #allocation3 [shape = 'f32[1]{0:T(128)S(6)}', space=smem, size = 0x200, scoped, tag = 'scoped memory for tpu_custom_call.1']
  %s0 = inlined_call_operand.<no memory space> [shape: f32[1], index: 0, kind: input, shape index: {}]
  %s1 = inlined_call_operand.<no memory space> [shape: f32[1], index: 1, kind: input, shape index: {}]
  %s2 = inlined_call_operand.hbm [shape: f32[16,128], index: 2, kind: input, shape index: {}]
  %s3 = inlined_call_operand.hbm [shape: f32[16,128], index: 3, kind: output, shape index: {}]
  %s4 = sld [smem:[#allocation0]]
  $region26: #{tpu_custom_call.1} parent=0
    _
  %s6 = ssub.s32 1, %s4
  %s7 = scalar_select 0, %s6, %s4
  %8 = sst [smem:[#allocation2]] %s0
  %9 = sst [smem:[#allocation3]] %s1
  $region1: #{tpu_custom_call.1} parent=0
    #allocation4 [shape = 'u8[8192]{0}', space=vmem, size = 0x2000, scoped, tag = 'input window, operand 2, single buffered']
    #allocation5 [shape = 's32[1]{0}', space=sflag, size = 0x4, scoped, tag = 'scoped memory for tpu_custom_call.1']
    #allocation6 [shape = 's32[1]{0}', space=sflag, size = 0x4, scoped, tag = 'scoped memory for tpu_custom_call.1']
    #allocation7 [shape = 'u8[8192]{0}', space=vmem, size = 0x2000, scoped, tag = 'output window, operand 0, single buffered']
    %10 = vsyncpa [#allocation5], 0
    %11 = vsyncpa [#allocation6], 0
    // Predicated region
    $region2: #{tpu_custom_call.1} parent=1 // pred_check
      _
    $region3: #{tpu_custom_call.1} parent=1 // pred_check_branch
      %13 = sbr.rel (0) target = $region5
    $region4: #{tpu_custom_call.1} parent=1 // pred_region
      _
    $region5: #{tpu_custom_call.1} parent=1 // pred_fallthru
      _
    // Predicated region
    $region6: #{tpu_custom_call.1} parent=1 // pred_check
      _
    $region7: #{tpu_custom_call.1} parent=1 // pred_check_branch
      %15 = sbr.rel (0) target = $region9
    $region8: #{tpu_custom_call.1} parent=1 // pred_region
      _
    $region9: #{tpu_custom_call.1} parent=1 // pred_fallthru
      _
    // Predicated region
    $region10: #{tpu_custom_call.1} parent=1 // pred_check
      _
    $region11: #{tpu_custom_call.1} parent=1 // pred_check_branch
      %17 = sbr.rel (0) target = $region13
    $region12: #{tpu_custom_call.1} parent=1 // pred_region
      %s19 = ssub.s32 256, 256
      %20 = vsyncadd [#allocation5], %s19
      %s21 = sshll.u32 [#allocation4], 4
      %s22 = int_to_ptr.vmem [resolvable:$true] %s21
      %27 = dma.hbm_to_vmem [thread:$0]  %s2, 256, %s22, [#allocation5], 128, 128, 8
    $region13: #{tpu_custom_call.1} parent=1 // pred_fallthru
      _
    // Predicated region
    $region14: #{tpu_custom_call.1} parent=1 // pred_check
      _
    $region15: #{tpu_custom_call.1} parent=1 // pred_check_branch
      %29 = sbr.rel (0) target = $region17
    $region16: #{tpu_custom_call.1} parent=1 // pred_region
      %30 = dma.done [#allocation5], 256
    $region17: #{tpu_custom_call.1} parent=1 // pred_fallthru
      _
    %v31 = vld [vmem:[#allocation4] sm:$0xff]
    %v32 = vld [vmem:[#allocation4 + $0x8] sm:$0xff]
    %33 = vadd.xlane.f32.xlu0 %v31
    %v34 = vpop.xlane.xlu0 %33
    %35 = vadd.xlane.f32.xlu0 %v32
    %v36 = vpop.xlane.xlu0 %35
    %v37 = vmul.f32 %v34, 0.0078125
    %v38 = vmul.f32 %v36, 0.0078125
    %v39 = vsub.f32 %v31, %v37
    %v40 = vsub.f32 %v32, %v38
    %v41 = vmul.f32 %v39, %v39
    %v42 = vmul.f32 %v40, %v40
    %43 = vadd.xlane.f32.xlu0 %v41
    %v44 = vpop.xlane.xlu0 %43
    %45 = vadd.xlane.f32.xlu0 %v42
    %v46 = vpop.xlane.xlu0 %45
    %v47 = vmul.f32 %v44, 0.007874016
    %v48 = vmul.f32 %v46, 0.007874016
    %v49 = vrsqrt.pop %v47
    %v50 = vmul.f32 %v47, %v49
    %vm51 = vcmp.eq.f32.partialorder %v47, inf
    %v52 = vsel %vm51, %v47, %v50
    %vm53 = vcmp.eq.f32.partialorder %v47, 0.0
    %v54 = vand.u32 %v47, 2147483648
    %v55 = vsel %vm53, %v54, %v52
    %v56 = vrsqrt.pop %v48
    %v57 = vmul.f32 %v48, %v56
    %vm58 = vcmp.eq.f32.partialorder %v48, inf
    %v59 = vsel %vm58, %v48, %v57
    %vm60 = vcmp.eq.f32.partialorder %v48, 0.0
    %v61 = vand.u32 %v48, 2147483648
    %v62 = vsel %vm60, %v61, %v59
    %s63 = sld [smem:[#allocation2]]
    %v64 = vadd.f32 %v55, 10000.0
    %v65 = vadd.f32 %v62, 10000.0
    %v66 = vstv %s63
    %v67 = vrcp.pop %v64
    %v68 = vmul.f32 %v66, %v67
    %v69 = vrcp.pop %v65
    %v70 = vmul.f32 %v66, %v69
    %v71 = vmul.f32 %v39, %v68
    %v72 = vmul.f32 %v40, %v70
    %s73 = sld [smem:[#allocation3]]
    %v74 = vstv %s73
    %v75 = vadd.f32 %v71, %v74
    %v76 = vadd.f32 %v72, %v74
    %77 = vst [vmem:[#allocation7] sm:$0xff] %v75
    %78 = vst [vmem:[#allocation7 + $0x8] sm:$0xff] %v76
    // Predicated region
    $region18: #{tpu_custom_call.1} parent=1 // pred_check
      _
    $region19: #{tpu_custom_call.1} parent=1 // pred_check_branch
      %80 = sbr.rel (0) target = $region21
    $region20: #{tpu_custom_call.1} parent=1 // pred_region
      %s82 = ssub.s32 256, 256
      %83 = vsyncadd [#allocation6], %s82
      %s84 = sshll.u32 [#allocation7], 4
      %s85 = int_to_ptr.vmem [resolvable:$true] %s84
      %90 = dma.vmem_to_hbm [thread:$0]  %s85, 256, %s3, [#allocation6], 128, 128, 8
    $region21: #{tpu_custom_call.1} parent=1 // pred_fallthru
      _
    // Predicated region
    $region22: #{tpu_custom_call.1} parent=1 // pred_check
      _
    $region23: #{tpu_custom_call.1} parent=1 // pred_check_branch
      %92 = sbr.rel (0) target = $region25
    $region24: #{tpu_custom_call.1} parent=1 // pred_region
      %93 = dma.done [#allocation6], 256
    $region25: #{tpu_custom_call.1} parent=1 // pred_fallthru
      _
    %94 = vsyncpa [#allocation5], 1
    %95 = vsyncpa [#allocation6], 1

</llo_original>
